<compile_context>
chip_gen: v6e
topology: v6e:2x2x1
jax: 0.10.0
libtpu: 0.0.40
codegen_flags: <defaults>
</compile_context>

<pallas_src>
import functools
import math

import jax
import jax.numpy as jnp
from jax import lax
from jax.experimental import pallas as pl
from jax.experimental.pallas import tpu as pltpu


# ----------------------------- helpers ---------------------------------------
def _blk(dim, pref, quantum):
    """Largest multiple of `quantum` that divides `dim` and is <= `pref`;
    falls back to the full dim (always a legal Pallas block)."""
    best = dim
    for cand in range(quantum, min(dim, pref) + 1, quantum):
        if dim % cand == 0:
            best = cand
    return best


def _round_up(x, q):
    return ((x + q - 1) // q) * q


@functools.lru_cache(maxsize=None)
def _vmem_limit_bytes():
    # Per-generation scoped-VMEM budget (~3/4 of physical: 96 MiB on v5e/v6e,
    # 48 MiB on v7x).  Tiles used here stay well under this in all cases.
    try:
        cap = int(pltpu.get_tpu_info().vmem_capacity_bytes)
        return max(32 * 1024 * 1024, min(96 * 1024 * 1024, (cap * 3) // 4))
    except Exception:
        return 48 * 1024 * 1024


# ----------------------------- camera kernel ----------------------------------
def _camera_kernel(x_ref, w_ref, o_ref):
    # x_ref: (B, S2) bf16, w_ref: (TM, S2) bf16 (pre-clipped), o_ref: (B, TM) bf16
    meas = lax.dot_general(x_ref[...], w_ref[...], (((1,), (1,)), ((), ())),
                           preferred_element_type=jnp.float32)   # (B, TM) f32
    o_ref[...] = jnp.clip(meas, 0.0, 1.0).astype(o_ref.dtype)    # clamp(meas, 0, 1)


def single_pixel_camera(x_tbs, w_packed, *, tm_pref=128):
    """x_tbs: (t, B, s*s) bf16.  w_packed: (t, Mpad, s*s) bf16 (pre-clipped).
    Returns (t, B, Mpad) bf16 clipped measurements."""
    t, B, S2 = x_tbs.shape
    _, Mpad, _ = w_packed.shape
    tm = _blk(Mpad, tm_pref, 128)          # lane-dense output tiles
    grid = (t, Mpad // tm)
    return pl.pallas_call(
        _camera_kernel,
        out_shape=jax.ShapeDtypeStruct((t, B, Mpad), jnp.bfloat16),
        grid=grid,
        in_specs=[
            # x block revisited across the inner M-tile axis.
            pl.BlockSpec((None, B, S2), lambda c, m: (c, 0, 0)),
            pl.BlockSpec((None, tm, S2), lambda c, m: (c, m, 0)),
        ],
        out_specs=pl.BlockSpec((None, B, tm), lambda c, m: (c, 0, m)),
        compiler_params=pltpu.CompilerParams(
            dimension_semantics=("parallel", "parallel"),
            vmem_limit_bytes=_vmem_limit_bytes(),
        ),
    )(x_tbs, w_packed)


# --------------------------- fc6 / fc7 (linear+relu) --------------------------
def _linear_kernel(x_ref, w_ref, b_ref, o_ref, acc_ref, *, relu):
    @pl.when(pl.program_id(2) == 0)
    def _init():
        acc_ref[...] = jnp.zeros_like(acc_ref)

    # bf16 x bf16 -> f32 accumulate (full-rate MXU path).
    acc_ref[...] += jnp.dot(x_ref[...], w_ref[...],
                            preferred_element_type=jnp.float32)

    @pl.when(pl.program_id(2) == pl.num_programs(2) - 1)
    def _done():
        r = acc_ref[...] + b_ref[...]
        if relu:
            r = jnp.maximum(r, 0.0)
        o_ref[...] = r.astype(o_ref.dtype)


def linear(x, w, b, *, relu, out_dtype=jnp.bfloat16,
           tb_pref=512, tn_pref=512, tk_pref=1024):
    """x: (B, K) bf16, w: (K, N) bf16, b: (1, N) f32 -> (B, N) out_dtype."""
    B, K = x.shape
    Kw, N = w.shape
    assert K == Kw
    tb = _blk(B, tb_pref, 8)
    tn = _blk(N, tn_pref, 128)
    tk = _blk(K, tk_pref, 128)
    grid = (B // tb, N // tn, K // tk)
    return pl.pallas_call(
        functools.partial(_linear_kernel, relu=relu),
        out_shape=jax.ShapeDtypeStruct((B, N), out_dtype),
        grid=grid,
        in_specs=[
            pl.BlockSpec((tb, tk), lambda i, j, k: (i, k)),
            pl.BlockSpec((tk, tn), lambda i, j, k: (k, j)),
            pl.BlockSpec((1, tn), lambda i, j, k: (0, j)),
        ],
        out_specs=pl.BlockSpec((tb, tn), lambda i, j, k: (i, j)),
        scratch_shapes=[pltpu.VMEM((tb, tn), jnp.float32)],
        compiler_params=pltpu.CompilerParams(
            dimension_semantics=("parallel", "parallel", "arbitrary"),
            vmem_limit_bytes=_vmem_limit_bytes(),
        ),
    )(x, w, b)


# ------------------------- fc8 + log_softmax kernel ---------------------------
def _fc8_kernel(x_ref, w_ref, b_ref, o_ref, acc_ref):
    @pl.when(pl.program_id(1) == 0)
    def _init():
        acc_ref[...] = jnp.zeros_like(acc_ref)

    acc_ref[...] += jnp.dot(x_ref[...], w_ref[...],
                            preferred_element_type=jnp.float32)

    @pl.when(pl.program_id(1) == pl.num_programs(1) - 1)
    def _done():
        logits = acc_ref[...] + b_ref[...]          # padded classes get -1e30
        m = jnp.max(logits, axis=-1, keepdims=True)
        z = logits - m
        lse = jnp.log(jnp.sum(jnp.exp(z), axis=-1, keepdims=True))
        o_ref[...] = z - lse


def fc8_log_softmax(x, w, b, *, tb_pref=512, tk_pref=2048):
    """x: (B, K) bf16, w: (K, Cpad) bf16, b: (1, Cpad) f32 -> (B, Cpad) log-probs."""
    B, K = x.shape
    _, Cpad = w.shape
    tb = _blk(B, tb_pref, 8)
    tk = _blk(K, tk_pref, 128)
    grid = (B // tb, K // tk)
    return pl.pallas_call(
        _fc8_kernel,
        out_shape=jax.ShapeDtypeStruct((B, Cpad), jnp.float32),
        grid=grid,
        in_specs=[
            pl.BlockSpec((tb, tk), lambda i, k: (i, k)),
            pl.BlockSpec((tk, Cpad), lambda i, k: (k, 0)),
            pl.BlockSpec((1, Cpad), lambda i, k: (0, 0)),
        ],
        out_specs=pl.BlockSpec((tb, Cpad), lambda i, k: (i, 0)),
        scratch_shapes=[pltpu.VMEM((tb, Cpad), jnp.float32)],
        compiler_params=pltpu.CompilerParams(
            dimension_semantics=("parallel", "arbitrary"),
            vmem_limit_bytes=_vmem_limit_bytes(),
        ),
    )(x, w, b)


# ----------------------- one-time parameter packing ---------------------------
def prepare_spc_params(cam_w, w6, b6, w7, b7, w8, b8, *, s, t):
    """One-time weight packing (amortized over all forward steps):
      * camera weight: clip to [0,1] in f32, reshape/transpose to (t, Mpad, s*s),
        pad M up to a multiple of 128, store bf16 (clip-then-cast);
      * fc weights: bf16; biases stay f32;
      * fc8: pad classes to a multiple of 128 with zero weight columns and
        -1e30 bias so log_softmax is unaffected (sliced off after the call)."""
    S2 = s * s
    M = S2 // t
    Mpad = _round_up(M, 128)
    w_cam = jnp.clip(cam_w, 0.0, 1.0).reshape(M, t, S2)           # clamp once
    w_cam = jnp.transpose(w_cam, (1, 0, 2))                       # (t, M, S2)
    w_cam = jnp.pad(w_cam, ((0, 0), (0, Mpad - M), (0, 0)))       # (t, Mpad, S2)

    C = w8.shape[1]
    Cpad = _round_up(C, 128)
    w8p = jnp.pad(w8, ((0, 0), (0, Cpad - C)))
    b8p = jnp.pad(b8, ((0, 0), (0, Cpad - C)), constant_values=-1e30)

    return {
        "cam_w": w_cam.astype(jnp.bfloat16),
        "w6": w6.astype(jnp.bfloat16), "b6": b6.astype(jnp.float32),
        "w7": w7.astype(jnp.bfloat16), "b7": b7.astype(jnp.float32),
        "w8": w8p.astype(jnp.bfloat16), "b8": b8p.astype(jnp.float32),
    }


# ------------------------------- full model -----------------------------------
def spc_forward(x5, params, *, s, t, num_classes):
    """x5: (B, 1, t, s, s) f32 (PyTorch NC(D)HW). Returns (B, num_classes) log-probs."""
    B = x5.shape[0]
    S2 = s * s
    M = S2 // t
    # Activation relayout only (weights are never touched at runtime); bf16 x
    # halves camera HBM/VMEM traffic (values get clipped to [0,1] right after).
    x_tbs = jnp.transpose(x5.reshape(B, t, S2), (1, 0, 2)).astype(jnp.bfloat16)
    meas = single_pixel_camera(x_tbs, params["cam_w"])             # (t, B, Mpad) bf16
    # (t, B, Mpad) -> (B, M, t) -> (B, M*t) == torch .view(-1, s*s) ordering.
    meas = jnp.transpose(meas, (1, 2, 0))[:, :M, :].reshape(B, S2)
    h = linear(meas, params["w6"], params["b6"], relu=True)        # fc6 + relu (bf16 out)
    h = linear(h, params["w7"], params["b7"], relu=True)           # fc7 + relu (bf16 out)
    logp = fc8_log_softmax(h, params["w8"], params["b8"])          # (B, Cpad) f32
    return logp[:, :num_classes]


# ------------------------------- reference ------------------------------------
def spc_reference(x5, cam_w, w6, b6, w7, b7, w8, b8, *, s, t):
    # Mirrors the kernel's quantization points (bf16 weights, bf16 x, bf16
    # inter-layer activations, f32 accumulation) so the comparison isolates the
    # Pallas math rather than the precision policy.
    q = lambda a: a.astype(jnp.bfloat16).astype(jnp.float32)
    B = x5.shape[0]
    wc = q(jnp.clip(cam_w, 0.0, 1.0))                              # clip-then-bf16
    xq = q(x5)
    meas = jnp.clip(jnp.sum(xq * wc[None], axis=(3, 4)), 0.0, 1.0)  # (B, M, t)
    meas = q(meas).reshape(B, s * s)                               # camera emits bf16
    with jax.default_matmul_precision("highest"):
        h = q(jax.nn.relu(meas @ q(w6) + b6))
        h = q(jax.nn.relu(h @ q(w7) + b7))
        logits = h @ q(w8) + b8
    return jax.nn.log_softmax(logits, axis=1)


if __name__ == "__main__":
    # Small shapes consistent with the module structure (module hardcodes
    # s=112, t=16, hidden=4096, classes=400; scaled down for the demo but
    # chosen so every kernel exercises its grid/padding paths).
    s, t = 16, 4
    M = s * s // t            # 64
    D1 = s * s                # 256  (fc6 input dim)
    H = 256                   # hidden (stands in for 4096)
    C = 16                    # num_classes (stands in for 400; padded to 128)
    B = 8

    key = jax.random.PRNGKey(0)
    kx, kc, k6w, k6b, k7w, k7b, k8w, k8b = jax.random.split(key, 8)

    x = jax.random.normal(kx, (B, 1, t, s, s), dtype=jnp.float32)

    # camera weight ~ Normal(0.5, sqrt(2 / s^4))
    cam_w = 0.5 + math.sqrt(2.0 / s ** 4) * jax.random.normal(
        kc, (M, t, s, s), dtype=jnp.float32)

    def linear_init(kw, kb, fan_in, fan_out):
        bound = 1.0 / math.sqrt(fan_in)
        w = jax.random.uniform(kw, (fan_in, fan_out), jnp.float32, -bound, bound)
        b = jax.random.uniform(kb, (1, fan_out), jnp.float32, -bound, bound)
        return w, b

    w6, b6 = linear_init(k6w, k6b, D1, H)
    w7, b7 = linear_init(k7w, k7b, H, H)
    w8, b8 = linear_init(k8w, k8b, H, C)

    params = prepare_spc_params(cam_w, w6, b6, w7, b7, w8, b8, s=s, t=t)
    fwd = jax.jit(functools.partial(spc_forward, s=s, t=t, num_classes=C))

    out = jax.block_until_ready(fwd(x, params))

    ref = spc_reference(x, cam_w, w6, b6, w7, b7, w8, b8, s=s, t=t)
    assert out.shape == (B, C), out.shape
    max_err = float(jnp.max(jnp.abs(out - ref)))
    # bf16 activations/x loosen bit-level agreement vs the mirrored f32
    # reference (per review); 2e-2 is comfortably above observed error.
    assert jnp.allclose(out, ref, atol=2e-2, rtol=2e-2), f"mismatch: {max_err}"

    print("KERNEL_OK")
</pallas_src>

<mosaic_0001>
module attributes {stable_mosaic.version = 11 : i64} {
  func.func @_camera_kernel(%arg0: i32, %arg1: i32, %arg2: memref<1x8x256xbf16, #tpu.memory_space<vmem>>, %arg3: memref<1x128x256xbf16, #tpu.memory_space<vmem>>, %arg4: memref<1x8x128xbf16, #tpu.memory_space<vmem>>) attributes {dimension_semantics = [#tpu.dimension_semantics<parallel>, #tpu.dimension_semantics<parallel>], iteration_bounds = array<i64: 4, 1>, scalar_prefetch = 0 : i64, scratch_operands = 0 : i64, tpu.core_type = #tpu.core_type<tc>, window_params = [{transform_indices = @transform_0, window_bounds = array<i64: 1, 8, 256>}, {transform_indices = @transform_1, window_bounds = array<i64: 1, 128, 256>}, {transform_indices = @transform_2, window_bounds = array<i64: 1, 8, 128>}]} {
    %c0 = arith.constant 0 : index
    %c0_0 = arith.constant 0 : index
    %c0_1 = arith.constant 0 : index
    %0 = vector.load %arg2[%c0, %c0_0, %c0_1] : memref<1x8x256xbf16, #tpu.memory_space<vmem>>, vector<1x8x256xbf16>
    %1 = vector.shape_cast %0 : vector<1x8x256xbf16> to vector<8x256xbf16>
    %c0_2 = arith.constant 0 : index
    %c0_3 = arith.constant 0 : index
    %c0_4 = arith.constant 0 : index
    %2 = vector.load %arg3[%c0_2, %c0_3, %c0_4] : memref<1x128x256xbf16, #tpu.memory_space<vmem>>, vector<1x128x256xbf16>
    %3 = vector.shape_cast %2 : vector<1x128x256xbf16> to vector<128x256xbf16>
    %cst = arith.constant dense<0.000000e+00> : vector<8x128xf32>
    %4 = tpu.matmul %1, %3, %cst {dimension_numbers = #tpu.dot_dimension_numbers<[1], [1], [0], [0], [0, 0, 1, 0], [], []>} : vector<8x256xbf16>, vector<128x256xbf16>, vector<8x128xf32> -> vector<8x128xf32>
    %cst_5 = arith.constant 0.000000e+00 : f32
    %cst_6 = arith.constant 1.000000e+00 : f32
    %5 = vector.broadcast %cst_5 : f32 to vector<8x128xf32>
    %6 = arith.maximumf %5, %4 : vector<8x128xf32>
    %7 = vector.broadcast %cst_6 : f32 to vector<8x128xf32>
    %8 = arith.minimumf %7, %6 : vector<8x128xf32>
    %9 = arith.truncf %8 : vector<8x128xf32> to vector<8x128xbf16>
    %c0_7 = arith.constant 0 : index
    %c0_8 = arith.constant 0 : index
    %c0_9 = arith.constant 0 : index
    %10 = vector.load %arg4[%c0_7, %c0_8, %c0_9] : memref<1x8x128xbf16, #tpu.memory_space<vmem>>, vector<1x8x128xbf16>
    %11 = vector.shape_cast %10 : vector<1x8x128xbf16> to vector<8x128xbf16>
    %12 = vector.shape_cast %9 : vector<8x128xbf16> to vector<1x8x128xbf16>
    tpu.vector_store %arg4[%c0_7, %c0_8, %c0_9], %12 {strides = array<i32>} : memref<1x8x128xbf16, #tpu.memory_space<vmem>>, vector<1x8x128xbf16>,
    return
  }
  func.func @transform_0(%arg0: i32, %arg1: i32) -> (i32, i32, i32) {
    %c0_i32 = arith.constant 0 : i32
    %c0_i32_0 = arith.constant 0 : i32
    %c0_i32_1 = arith.constant 0 : i32
    return %arg0, %c0_i32, %c0_i32_0 : i32, i32, i32
  }
  func.func @transform_1(%arg0: i32, %arg1: i32) -> (i32, i32, i32) {
    %c0_i32 = arith.constant 0 : i32
    %c0_i32_0 = arith.constant 0 : i32
    return %arg0, %arg1, %c0_i32 : i32, i32, i32
  }
  func.func @transform_2(%arg0: i32, %arg1: i32) -> (i32, i32, i32) {
    %c0_i32 = arith.constant 0 : i32
    %c0_i32_0 = arith.constant 0 : i32
    return %arg0, %c0_i32, %arg1 : i32, i32, i32
  }
}

module attributes {stable_mosaic.version = 11 : i64} {
  func.func @_linear_kernel(%arg0: i32, %arg1: i32, %arg2: i32, %arg3: memref<8x256xbf16, #tpu.memory_space<vmem>>, %arg4: memref<256x256xbf16, #tpu.memory_space<vmem>>, %arg5: memref<1x256xf32, #tpu.memory_space<vmem>>, %arg6: memref<8x256xbf16, #tpu.memory_space<vmem>>, %arg7: memref<8x256xf32, #tpu.memory_space<vmem>>) attributes {dimension_semantics = [#tpu.dimension_semantics<parallel>, #tpu.dimension_semantics<parallel>, #tpu.dimension_semantics<arbitrary>], iteration_bounds = array<i64: 1, 1, 1>, scalar_prefetch = 0 : i64, scratch_operands = 1 : i64, tpu.core_type = #tpu.core_type<tc>, window_params = [{transform_indices = @transform_0, window_bounds = array<i64: 8, 256>}, {transform_indices = @transform_1, window_bounds = array<i64: 256, 256>}, {transform_indices = @transform_2, window_bounds = array<i64: 1, 256>}, {transform_indices = @transform_3, window_bounds = array<i64: 8, 256>}]} {
    %c0_i32 = arith.constant 0 : i32
    %0 = arith.cmpi eq, %arg2, %c0_i32 : i32
    %1 = arith.extui %0 : i1 to i32
    %c0_i32_0 = arith.constant 0 : i32
    %2 = arith.cmpi ne, %1, %c0_i32_0 : i32
    scf.if %2 {
      %cst_10 = arith.constant 0.000000e+00 : f32
      %12 = vector.broadcast %cst_10 : f32 to vector<8x256xf32>
      %c0_11 = arith.constant 0 : index
      %c0_12 = arith.constant 0 : index
      %13 = vector.load %arg7[%c0_11, %c0_12] : memref<8x256xf32, #tpu.memory_space<vmem>>, vector<8x256xf32>
      tpu.vector_store %arg7[%c0_11, %c0_12], %12 {strides = array<i32>} : memref<8x256xf32, #tpu.memory_space<vmem>>, vector<8x256xf32>,
    } else {
    }
    %c0 = arith.constant 0 : index
    %c0_1 = arith.constant 0 : index
    %3 = vector.load %arg7[%c0, %c0_1] : memref<8x256xf32, #tpu.memory_space<vmem>>, vector<8x256xf32>
    %c0_2 = arith.constant 0 : index
    %c0_3 = arith.constant 0 : index
    %4 = vector.load %arg3[%c0_2, %c0_3] : memref<8x256xbf16, #tpu.memory_space<vmem>>, vector<8x256xbf16>
    %c0_4 = arith.constant 0 : index
    %c0_5 = arith.constant 0 : index
    %5 = vector.load %arg4[%c0_4, %c0_5] : memref<256x256xbf16, #tpu.memory_space<vmem>>, vector<256x256xbf16>
    %cst = arith.constant dense<0.000000e+00> : vector<8x256xf32>
    %6 = tpu.matmul %4, %5, %cst {dimension_numbers = #tpu.dot_dimension_numbers<[1], [0], [0], [1], [0, 0, 1, 1], [], []>} : vector<8x256xbf16>, vector<256x256xbf16>, vector<8x256xf32> -> vector<8x256xf32>
    %7 = arith.addf %3, %6 : vector<8x256xf32>
    %c0_6 = arith.constant 0 : index
    %c0_7 = arith.constant 0 : index
    %8 = vector.load %arg7[%c0_6, %c0_7] : memref<8x256xf32, #tpu.memory_space<vmem>>, vector<8x256xf32>
    tpu.vector_store %arg7[%c0_6, %c0_7], %7 {strides = array<i32>} : memref<8x256xf32, #tpu.memory_space<vmem>>, vector<8x256xf32>,
    %c0_i32_8 = arith.constant 0 : i32
    %9 = arith.cmpi eq, %arg2, %c0_i32_8 : i32
    %10 = arith.extui %9 : i1 to i32
    %c0_i32_9 = arith.constant 0 : i32
    %11 = arith.cmpi ne, %10, %c0_i32_9 : i32
    scf.if %11 {
      %c0_10 = arith.constant 0 : index
      %c0_11 = arith.constant 0 : index
      %12 = vector.load %arg7[%c0_10, %c0_11] : memref<8x256xf32, #tpu.memory_space<vmem>>, vector<8x256xf32>
      %c0_12 = arith.constant 0 : index
      %c0_13 = arith.constant 0 : index
      %13 = vector.load %arg5[%c0_12, %c0_13] : memref<1x256xf32, #tpu.memory_space<vmem>>, vector<1x256xf32>
      %14 = vector.broadcast %13 : vector<1x256xf32> to vector<8x256xf32>
      %15 = arith.addf %12, %14 : vector<8x256xf32>
      %cst_14 = arith.constant 0.000000e+00 : f32
      %16 = vector.broadcast %cst_14 : f32 to vector<8x256xf32>
      %17 = arith.maximumf %15, %16 : vector<8x256xf32>
      %18 = arith.truncf %17 : vector<8x256xf32> to vector<8x256xbf16>
      %c0_15 = arith.constant 0 : index
      %c0_16 = arith.constant 0 : index
      %19 = vector.load %arg6[%c0_15, %c0_16] : memref<8x256xbf16, #tpu.memory_space<vmem>>, vector<8x256xbf16>
      tpu.vector_store %arg6[%c0_15, %c0_16], %18 {strides = array<i32>} : memref<8x256xbf16, #tpu.memory_space<vmem>>, vector<8x256xbf16>,
    } else {
    }
    return
  }
  func.func @transform_0(%arg0: i32, %arg1: i32, %arg2: i32) -> (i32, i32) {
    %c0_i32 = arith.constant 0 : i32
    return %arg0, %arg2 : i32, i32
  }
  func.func @transform_1(%arg0: i32, %arg1: i32, %arg2: i32) -> (i32, i32) {
    %c0_i32 = arith.constant 0 : i32
    return %arg2, %arg1 : i32, i32
  }
  func.func @transform_2(%arg0: i32, %arg1: i32, %arg2: i32) -> (i32, i32) {
    %c0_i32 = arith.constant 0 : i32
    %c0_i32_0 = arith.constant 0 : i32
    return %c0_i32, %arg1 : i32, i32
  }
  func.func @transform_3(%arg0: i32, %arg1: i32, %arg2: i32) -> (i32, i32) {
    %c0_i32 = arith.constant 0 : i32
    return %arg0, %arg1 : i32, i32
  }
}

module attributes {stable_mosaic.version = 11 : i64} {
  func.func @_fc8_kernel(%arg0: i32, %arg1: i32, %arg2: memref<8x256xbf16, #tpu.memory_space<vmem>>, %arg3: memref<256x128xbf16, #tpu.memory_space<vmem>>, %arg4: memref<1x128xf32, #tpu.memory_space<vmem>>, %arg5: memref<8x128xf32, #tpu.memory_space<vmem>>, %arg6: memref<8x128xf32, #tpu.memory_space<vmem>>) attributes {dimension_semantics = [#tpu.dimension_semantics<parallel>, #tpu.dimension_semantics<arbitrary>], iteration_bounds = array<i64: 1, 1>, scalar_prefetch = 0 : i64, scratch_operands = 1 : i64, tpu.core_type = #tpu.core_type<tc>, window_params = [{transform_indices = @transform_0, window_bounds = array<i64: 8, 256>}, {transform_indices = @transform_1, window_bounds = array<i64: 256, 128>}, {pipeline_mode = #tpu.pipeline_mode<synchronous>, transform_indices = @transform_2, window_bounds = array<i64: 1, 128>}, {transform_indices = @transform_3, window_bounds = array<i64: 8, 128>}]} {
    %c0_i32 = arith.constant 0 : i32
    %0 = arith.cmpi eq, %arg1, %c0_i32 : i32
    %1 = arith.extui %0 : i1 to i32
    %c0_i32_0 = arith.constant 0 : i32
    %2 = arith.cmpi ne, %1, %c0_i32_0 : i32
    scf.if %2 {
      %cst_10 = arith.constant 0.000000e+00 : f32
      %12 = vector.broadcast %cst_10 : f32 to vector<8x128xf32>
      %c0_11 = arith.constant 0 : index
      %c0_12 = arith.constant 0 : index
      %13 = vector.load %arg6[%c0_11, %c0_12] : memref<8x128xf32, #tpu.memory_space<vmem>>, vector<8x128xf32>
      tpu.vector_store %arg6[%c0_11, %c0_12], %12 {strides = array<i32>} : memref<8x128xf32, #tpu.memory_space<vmem>>, vector<8x128xf32>,
    } else {
    }
    %c0 = arith.constant 0 : index
    %c0_1 = arith.constant 0 : index
    %3 = vector.load %arg6[%c0, %c0_1] : memref<8x128xf32, #tpu.memory_space<vmem>>, vector<8x128xf32>
    %c0_2 = arith.constant 0 : index
    %c0_3 = arith.constant 0 : index
    %4 = vector.load %arg2[%c0_2, %c0_3] : memref<8x256xbf16, #tpu.memory_space<vmem>>, vector<8x256xbf16>
    %c0_4 = arith.constant 0 : index
    %c0_5 = arith.constant 0 : index
    %5 = vector.load %arg3[%c0_4, %c0_5] : memref<256x128xbf16, #tpu.memory_space<vmem>>, vector<256x128xbf16>
    %cst = arith.constant dense<0.000000e+00> : vector<8x128xf32>
    %6 = tpu.matmul %4, %5, %cst {dimension_numbers = #tpu.dot_dimension_numbers<[1], [0], [0], [1], [0, 0, 1, 1], [], []>} : vector<8x256xbf16>, vector<256x128xbf16>, vector<8x128xf32> -> vector<8x128xf32>
    %7 = arith.addf %3, %6 : vector<8x128xf32>
    %c0_6 = arith.constant 0 : index
    %c0_7 = arith.constant 0 : index
    %8 = vector.load %arg6[%c0_6, %c0_7] : memref<8x128xf32, #tpu.memory_space<vmem>>, vector<8x128xf32>
    tpu.vector_store %arg6[%c0_6, %c0_7], %7 {strides = array<i32>} : memref<8x128xf32, #tpu.memory_space<vmem>>, vector<8x128xf32>,
    %c0_i32_8 = arith.constant 0 : i32
    %9 = arith.cmpi eq, %arg1, %c0_i32_8 : i32
    %10 = arith.extui %9 : i1 to i32
    %c0_i32_9 = arith.constant 0 : i32
    %11 = arith.cmpi ne, %10, %c0_i32_9 : i32
    scf.if %11 {
      %c0_10 = arith.constant 0 : index
      %c0_11 = arith.constant 0 : index
      %12 = vector.load %arg6[%c0_10, %c0_11] : memref<8x128xf32, #tpu.memory_space<vmem>>, vector<8x128xf32>
      %c0_12 = arith.constant 0 : index
      %c0_13 = arith.constant 0 : index
      %13 = vector.load %arg4[%c0_12, %c0_13] : memref<1x128xf32, #tpu.memory_space<vmem>>, vector<1x128xf32>
      %14 = vector.broadcast %13 : vector<1x128xf32> to vector<8x128xf32>
      %15 = arith.addf %12, %14 : vector<8x128xf32>
      %cst_14 = arith.constant dense<0xFF800000> : vector<8xf32>
      %16 = vector.multi_reduction <maximumf>, %15, %cst_14 [1] : vector<8x128xf32> to vector<8xf32>
      %17 = vector.shape_cast %16 : vector<8xf32> to vector<8x1xf32>
      %18 = vector.broadcast %17 : vector<8x1xf32> to vector<8x128xf32>
      %19 = arith.subf %15, %18 : vector<8x128xf32>
      %20 = math.exp %19 : vector<8x128xf32>
      %cst_15 = arith.constant dense<0.000000e+00> : vector<8xf32>
      %21 = vector.multi_reduction <add>, %20, %cst_15 [1] : vector<8x128xf32> to vector<8xf32>
      %22 = vector.shape_cast %21 : vector<8xf32> to vector<8x1xf32>
      %23 = math.log %22 : vector<8x1xf32>
      %24 = vector.broadcast %23 : vector<8x1xf32> to vector<8x128xf32>
      %25 = arith.subf %19, %24 : vector<8x128xf32>
      %c0_16 = arith.constant 0 : index
      %c0_17 = arith.constant 0 : index
      %26 = vector.load %arg5[%c0_16, %c0_17] : memref<8x128xf32, #tpu.memory_space<vmem>>, vector<8x128xf32>
      tpu.vector_store %arg5[%c0_16, %c0_17], %25 {strides = array<i32>} : memref<8x128xf32, #tpu.memory_space<vmem>>, vector<8x128xf32>,
    } else {
    }
    return
  }
  func.func @transform_0(%arg0: i32, %arg1: i32) -> (i32, i32) {
    %c0_i32 = arith.constant 0 : i32
    return %arg0, %arg1 : i32, i32
  }
  func.func @transform_1(%arg0: i32, %arg1: i32) -> (i32, i32) {
    %c0_i32 = arith.constant 0 : i32
    %c0_i32_0 = arith.constant 0 : i32
    return %arg1, %c0_i32 : i32, i32
  }
  func.func @transform_2(%arg0: i32, %arg1: i32) -> (i32, i32) {
    %c0_i32 = arith.constant 0 : i32
    %c0_i32_0 = arith.constant 0 : i32
    %c0_i32_1 = arith.constant 0 : i32
    return %c0_i32, %c0_i32_0 : i32, i32
  }
  func.func @transform_3(%arg0: i32, %arg1: i32) -> (i32, i32) {
    %c0_i32 = arith.constant 0 : i32
    %c0_i32_0 = arith.constant 0 : i32
    return %arg0, %c0_i32 : i32, i32
  }
}

</mosaic_0001>

<llo_original>
// kernel: spc_forward.4
$region0: #{spc_forward.4}
  #allocation0 [shape = 'u32[]', space=smem, size = 0x4, offset = 0x4, fixed_abs, tag = 'smem constant byte address 0x4 - core index']
  #allocation1 [shape = 'u32[144,128]{1,0:T(1,128)}', space=vmem, size = 0x12000, scoped, tag = 'internal scratch']
  %s0 = inlined_call_operand.vmem [shape: bf16[4,8,256], index: 0, kind: input, shape index: {}]
  %s1 = inlined_call_operand.vmem [shape: bf16[4,128,256], index: 1, kind: input, shape index: {}]
  %s2 = inlined_call_operand.vmem [shape: bf16[4,8,128], index: 2, kind: output, shape index: {}]
  %s3 = sld [smem:[#allocation0]]
  $region41: #{spc_forward.4} parent=0
    _
  %s5 = ssub.s32 1, %s3
  %s6 = scalar_select 0, %s5, %s3
  loop: start=0, step=1, limit=6
  $region2: #{spc_forward.4} parent=0 // loop_pre_header
    _
  $region3: #{spc_forward.4} parent=0 // loop_header
    %s8 = sphi 0, %s12
    %p9 = scmp.ge.s32.totalorder %s8, 6
    %s15 = sphi 0, %s27
    %s16 = sphi 0, %s23
    %s17 = sphi 0, %s15
    %s18 = sphi 0, %s16
    %s19 = sphi 0, %s17
    %s20 = sphi 0, %s18
    %s30 = sphi 0, %s32
    %s33 = sphi 0, %s30
    %s34 = sphi 0, %s33
    %s50 = sphi 0, %s34
    %s58 = sphi 0, %s60
    %s61 = sphi 0, %s58
    %s62 = sphi 0, %s61
    %s78 = sphi 0, %s62
    %s86 = sphi 0, %s88
    %s89 = sphi 0, %s86
    %s90 = sphi 0, %s89
    %s106 = sphi 0, %s90
  $region4: #{spc_forward.4} parent=0 // loop_header_branch
    %11 = sbr.rel (%p9) target = $region8
  $region5: #{spc_forward.4} parent=0 // loop_body
    %s13 = ssub.s32 %s8, 1
    %s14 = ssub.s32 %s8, 2
    %s21 = sadd.s32 1, %s16
    %p22 = scmp.ge.s32.totalorder %s21, 1
    %s23 = scalar_select %p22, 0, %s21
    %s24 = sadd.s32 1, %s15
    %s25 = scalar_select %p22, %s24, %s15
    %p26 = scmp.ge.s32.totalorder %s25, 4
    %s27 = scalar_select %p26, 0, %s25
    %s28 = ssub.s32 %s15, %s27
    %p29 = scmp.eq.s32.totalorder %s28, 0
    %s31 = sadd.s32 %s30, 1
    %s32 = scalar_select %p29, %s30, %s31
    %p35 = pneg %p29
    %p36 = scmp.eq.s32.totalorder %s8, 3
    %p37 = por %p35, %p36
    %p38 = scmp.ne.s32.totalorder %s30, %s33
    %p39 = scmp.eq.s32.totalorder %s8, 0
    %p40 = por %p38, %p39
    %p41 = scmp.ne.s32.totalorder %s30, %s33
    %p42 = scmp.eq.s32.totalorder %s13, 3
    %p43 = por %p41, %p42
    %p44 = scmp.ne.s32.totalorder %s33, %s34
    %p45 = scmp.eq.s32.totalorder %s13, 0
    %p46 = por %p44, %p45
    %p47 = scmp.ne.s32.totalorder %s33, %s34
    %p48 = scmp.eq.s32.totalorder %s14, 3
    %p49 = por %p47, %p48
    %p51 = scmp.ne.s32.totalorder %s34, %s50
    %p52 = scmp.eq.s32.totalorder %s14, 0
    %p53 = por %p51, %p52
    %s54 = ssub.s32 %s15, %s27
    %s55 = ssub.s32 %s16, %s23
    %s56 = sor.u32 %s54, %s55
    %p57 = scmp.eq.s32.totalorder %s56, 0
    %s59 = sadd.s32 %s58, 1
    %s60 = scalar_select %p57, %s58, %s59
    %p63 = pneg %p57
    %p64 = scmp.eq.s32.totalorder %s8, 3
    %p65 = por %p63, %p64
    %p66 = scmp.ne.s32.totalorder %s58, %s61
    %p67 = scmp.eq.s32.totalorder %s8, 0
    %p68 = por %p66, %p67
    %p69 = scmp.ne.s32.totalorder %s58, %s61
    %p70 = scmp.eq.s32.totalorder %s13, 3
    %p71 = por %p69, %p70
    %p72 = scmp.ne.s32.totalorder %s61, %s62
    %p73 = scmp.eq.s32.totalorder %s13, 0
    %p74 = por %p72, %p73
    %p75 = scmp.ne.s32.totalorder %s61, %s62
    %p76 = scmp.eq.s32.totalorder %s14, 3
    %p77 = por %p75, %p76
    %p79 = scmp.ne.s32.totalorder %s62, %s78
    %p80 = scmp.eq.s32.totalorder %s14, 0
    %p81 = por %p79, %p80
    %s82 = ssub.s32 %s15, %s27
    %s83 = ssub.s32 %s16, %s23
    %s84 = sor.u32 %s82, %s83
    %p85 = scmp.eq.s32.totalorder %s84, 0
    %s87 = sadd.s32 %s86, 1
    %s88 = scalar_select %p85, %s86, %s87
    %p91 = pneg %p85
    %p92 = scmp.eq.s32.totalorder %s8, 3
    %p93 = por %p91, %p92
    %p94 = scmp.ne.s32.totalorder %s86, %s89
    %p95 = scmp.eq.s32.totalorder %s8, 0
    %p96 = por %p94, %p95
    %p97 = scmp.ne.s32.totalorder %s86, %s89
    %p98 = scmp.eq.s32.totalorder %s13, 3
    %p99 = por %p97, %p98
    %p100 = scmp.ne.s32.totalorder %s89, %s90
    %p101 = scmp.eq.s32.totalorder %s13, 0
    %p102 = por %p100, %p101
    %p103 = scmp.ne.s32.totalorder %s89, %s90
    %p104 = scmp.eq.s32.totalorder %s14, 3
    %p105 = por %p103, %p104
    %p107 = scmp.ne.s32.totalorder %s90, %s106
    %p108 = scmp.eq.s32.totalorder %s14, 0
    %p109 = por %p107, %p108
    %p110 = scmp.le.s32.totalorder 1, %s8
    %p111 = scmp.lt.s32.totalorder %s8, 5
    %p112 = pnand %p110, %p111
    %p113 = pneg %p112
    // Predicated region
    $region9: #{spc_forward.4} parent=5 // pred_check
      _
    $region10: #{spc_forward.4} parent=5 // pred_check_branch
      %115 = sbr.rel (%p112) target = $region12
    $region11: #{spc_forward.4} parent=5 // pred_region
      %s116 = ssub.s32 %s8, 1
    $region12: #{spc_forward.4} parent=5 // pred_fallthru
      _
    %p117 = scmp.lt.s32.totalorder %s8, 4
    // Predicated region
    $region13: #{spc_forward.4} parent=5 // pred_check
      %p118 = pneg %p117
    $region14: #{spc_forward.4} parent=5 // pred_check_branch
      %120 = sbr.rel (%p118) target = $region16
    $region15: #{spc_forward.4} parent=5 // pred_region
      // Predicated region
      $region17: #{spc_forward.4} parent=15 // pred_check
        %p121 = pneg %p40
      $region18: #{spc_forward.4} parent=15 // pred_check_branch
        %123 = sbr.rel (%p121) target = $region20
      $region19: #{spc_forward.4} parent=15 // pred_region
        %p124 = scmp.lt.s32.totalorder %s15, 3
        %s125 = scalar_select %p124, %s15, 3
        %s126 = smul.addr %s125, 2
        %s127 = smul.addr %s126, 4
        %s128 = scalar_lea.vmem %s0, %s127
      $region20: #{spc_forward.4} parent=15 // pred_fallthru
        _
      // Predicated region
      $region21: #{spc_forward.4} parent=15 // pred_check
        %p129 = pneg %p68
      $region22: #{spc_forward.4} parent=15 // pred_check_branch
        %131 = sbr.rel (%p129) target = $region24
      $region23: #{spc_forward.4} parent=15 // pred_region
        %s132 = smul.u32 16, %s16
        %p133 = scmp.lt.s32.totalorder %s15, 3
        %s134 = scalar_select %p133, %s15, 3
        %p135 = scmp.lt.s32.totalorder %s132, 15
        %s136 = scalar_select %p135, %s132, 15
        %s137 = smul.addr %s136, 2
        %s138 = smul.addr %s134, 32
        %s139 = sadd.s32 %s137, %s138
        %s140 = smul.addr %s139, 4
        %s141 = scalar_lea.vmem %s1, %s140
        %s142 = smul.u32 16, %s16
      $region24: #{spc_forward.4} parent=15 // pred_fallthru
        _
    $region16: #{spc_forward.4} parent=5 // pred_fallthru
      _
    %p143 = scmp.le.s32.totalorder 1, %s8
    %p144 = scmp.lt.s32.totalorder %s8, 5
    %p145 = pnand %p143, %p144
    %p146 = pneg %p145
    // Predicated region
    $region25: #{spc_forward.4} parent=5 // pred_check
      _
    $region26: #{spc_forward.4} parent=5 // pred_check_branch
      %148 = sbr.rel (%p145) target = $region28
    $region27: #{spc_forward.4} parent=5 // pred_region
      %s149 = ssub.s32 %s8, 1
      %p150 = scmp.lt.s32.totalorder %s17, 3
      %s151 = scalar_select %p150, %s17, 3
      %s152 = smul.addr %s151, 2
      %s153 = smul.addr %s152, 4
      %s154 = scalar_lea.vmem %s0, %s153
      %p155 = pneg %p46
      %p156 = pneg %p43
      %s157 = smul.u32 16, %s18
      %p158 = scmp.lt.s32.totalorder %s17, 3
      %s159 = scalar_select %p158, %s17, 3
      %p160 = scmp.lt.s32.totalorder %s157, 15
      %s161 = scalar_select %p160, %s157, 15
      %s162 = smul.addr %s161, 2
      %s163 = smul.addr %s159, 32
      %s164 = sadd.s32 %s162, %s163
      %s165 = smul.addr %s164, 4
      %s166 = scalar_lea.vmem %s1, %s165
      %p167 = pneg %p74
      %p168 = pneg %p71
      %p169 = pneg %p102
      %p170 = pneg %p99
      %p171 = scmp.lt.s32.totalorder %s17, 3
      %s172 = scalar_select %p171, %s17, 3
      %p173 = scmp.lt.s32.totalorder %s18, 0
      %s174 = scalar_select %p173, %s18, 0
      %s175 = sadd.s32 %s174, %s172
      %s176 = smul.addr %s175, 4
      %s177 = scalar_lea.vmem %s2, %s176
      %p178 = scmp.lt.s32.totalorder %s17, 3
      %s179 = scalar_select %p178, %s17, 3
      %s180 = smul.addr %s179, 2
      %s181 = smul.addr %s180, 4
      %s182 = scalar_lea.vmem %s0, %s181
      %s183 = smul.u32 16, %s18
      %p184 = scmp.lt.s32.totalorder %s17, 3
      %s185 = scalar_select %p184, %s17, 3
      %p186 = scmp.lt.s32.totalorder %s183, 15
      %s187 = scalar_select %p186, %s183, 15
      %s188 = smul.addr %s187, 2
      %s189 = smul.addr %s185, 32
      %s190 = sadd.s32 %s188, %s189
      %s191 = smul.addr %s190, 4
      %s192 = scalar_lea.vmem %s1, %s191
      %s193 = smul.u32 16, %s18
      %p194 = scmp.lt.s32.totalorder %s17, 3
      %s195 = scalar_select %p194, %s17, 3
      %p196 = scmp.lt.s32.totalorder %s18, 0
      %s197 = scalar_select %p196, %s18, 0
      %s198 = sadd.s32 %s197, %s195
      %s199 = smul.addr %s198, 4
      %s200 = scalar_lea.vmem %s2, %s199
      %v202 = vld [vmem:[%s182] sm:$0xff]
      %v203 = vld [vmem:[%s192] sm:$0xff]
      %v204 = vld [vmem:[%s192 + $0x8] sm:$0xff]
      %v205 = vld [vmem:[%s192 + $0x10] sm:$0xff]
      %v206 = vld [vmem:[%s192 + $0x18] sm:$0xff]
      %v207 = vld [vmem:[%s192 + $0x20] sm:$0xff]
      %v208 = vld [vmem:[%s192 + $0x28] sm:$0xff]
      %v209 = vld [vmem:[%s192 + $0x30] sm:$0xff]
      %v210 = vld [vmem:[%s192 + $0x38] sm:$0xff]
      %v211 = vld [vmem:[%s192 + $0x40] sm:$0xff]
      %v212 = vld [vmem:[%s192 + $0x48] sm:$0xff]
      %v213 = vld [vmem:[%s192 + $0x50] sm:$0xff]
      %v214 = vld [vmem:[%s192 + $0x58] sm:$0xff]
      %v215 = vld [vmem:[%s192 + $0x60] sm:$0xff]
      %v216 = vld [vmem:[%s192 + $0x68] sm:$0xff]
      %v217 = vld [vmem:[%s192 + $0x70] sm:$0xff]
      %v218 = vld [vmem:[%s192 + $0x78] sm:$0xff]
      %v220 = vunpack.c.l.b16 %v202
      %v221 = vunpack.c.h.b16 %v202
      %v222 = vpack.c.b16 %v220, %v220
      %v223 = vpack.c.b16 %v221, %v221
      %v242 = vunpack.c.l.b16 %v203
      %v243 = vunpack.c.h.b16 %v203
      %v244 = vunpack.c.l.b16 %v204
      %v245 = vunpack.c.h.b16 %v204
      %v246 = vunpack.c.l.b16 %v205
      %v247 = vunpack.c.h.b16 %v205
      %v248 = vunpack.c.l.b16 %v206
      %v249 = vunpack.c.h.b16 %v206
      %v250 = vunpack.c.l.b16 %v207
      %v251 = vunpack.c.h.b16 %v207
      %v252 = vunpack.c.l.b16 %v208
      %v253 = vunpack.c.h.b16 %v208
      %v254 = vunpack.c.l.b16 %v209
      %v255 = vunpack.c.h.b16 %v209
      %v256 = vunpack.c.l.b16 %v210
      %v257 = vunpack.c.h.b16 %v210
      %v258 = vunpack.c.l.b16 %v211
      %v259 = vunpack.c.h.b16 %v211
      %v260 = vunpack.c.l.b16 %v212
      %v261 = vunpack.c.h.b16 %v212
      %v262 = vunpack.c.l.b16 %v213
      %v263 = vunpack.c.h.b16 %v213
      %v264 = vunpack.c.l.b16 %v214
      %v265 = vunpack.c.h.b16 %v214
      %v266 = vunpack.c.l.b16 %v215
      %v267 = vunpack.c.h.b16 %v215
      %v268 = vunpack.c.l.b16 %v216
      %v269 = vunpack.c.h.b16 %v216
      %v270 = vunpack.c.l.b16 %v217
      %v271 = vunpack.c.h.b16 %v217
      %v272 = vunpack.c.l.b16 %v218
      %v273 = vunpack.c.h.b16 %v218
      %v274 = vpack.c.b16 %v244, %v242
      %v275 = vpack.c.b16 %v245, %v243
      %v276 = vpack.c.b16 %v248, %v246
      %v277 = vpack.c.b16 %v249, %v247
      %v278 = vpack.c.b16 %v252, %v250
      %v279 = vpack.c.b16 %v253, %v251
      %v280 = vpack.c.b16 %v256, %v254
      %v281 = vpack.c.b16 %v257, %v255
      %v282 = vpack.c.b16 %v260, %v258
      %v283 = vpack.c.b16 %v261, %v259
      %v284 = vpack.c.b16 %v264, %v262
      %v285 = vpack.c.b16 %v265, %v263
      %v286 = vpack.c.b16 %v268, %v266
      %v287 = vpack.c.b16 %v269, %v267
      %v288 = vpack.c.b16 %v272, %v270
      %v289 = vpack.c.b16 %v273, %v271
      %306 = vmatprep.subr.bf16.mxu0 %v289
      %307 = vmatpush1.bf16.xpose.msra.mxu0 %v288
      %308 = vmatprep.subr.bf16.mxu0 %v287
      %309 = vmatpush1.bf16.xpose.msra.mxu0 %v286
      %310 = vmatprep.subr.bf16.mxu0 %v285
      %311 = vmatpush1.bf16.xpose.msra.mxu0 %v284
      %312 = vmatprep.subr.bf16.mxu0 %v283
      %313 = vmatpush1.bf16.xpose.msra.mxu0 %v282
      %314 = vmatprep.subr.bf16.mxu0 %v281
      %315 = vmatpush1.bf16.xpose.msra.mxu0 %v280
      %316 = vmatprep.subr.bf16.mxu0 %v279
      %317 = vmatpush1.bf16.xpose.msra.mxu0 %v278
      %318 = vmatprep.subr.bf16.mxu0 %v277
      %319 = vmatpush1.bf16.xpose.msra.mxu0 %v276
      %320 = vmatprep.subr.bf16.mxu0 %v275
      %321 = vmatpush1.bf16.xpose.msra.mxu0 %v274
      %322 = vmatprep.subr.bf16.mxu0 0
      %323 = vmatpush2.bf16.xpose.msra.mxu0 0
      %324 = vmatprep.subr.bf16.mxu0 0
      %325 = vmatpush2.bf16.xpose.msra.mxu0 0
      %326 = vmatprep.subr.bf16.mxu0 0
      %327 = vmatpush2.bf16.xpose.msra.mxu0 0
      %328 = vmatprep.subr.bf16.mxu0 0
      %329 = vmatpush2.bf16.xpose.msra.mxu0 0
      %330 = vmatprep.subr.bf16.mxu0 0
      %331 = vmatpush2.bf16.xpose.msra.mxu0 0
      %332 = vmatprep.subr.bf16.mxu0 0
      %333 = vmatpush2.bf16.xpose.msra.mxu0 0
      %334 = vmatprep.subr.bf16.mxu0 0
      %335 = vmatpush2.bf16.xpose.msra.mxu0 0
      %336 = vmatprep.subr.bf16.mxu0 0
      %337 = vmatpush2.bf16.xpose.msra.mxu0 0
      %338 = vmatprep.mubr.bf16.mxu0 %v223
      %339 = vmatmul.mubr.bf16.gmra.mxu0 %v222
      %v340 = vpop.f32.mrf.mxu0
      %v341 = vadd.f32 0.0, %v340
      %v342 = vpop.f32.mrf.mxu0
      %v343 = vpop.f32.mrf.mxu0
      %v344 = vpop.f32.mrf.mxu0
      %345 = vdwg.mxu0
      %v346 = vmax.f32 %v341, 0.0
      %v347 = vmin.f32 %v346, 1.0
      %v348 = vpack.c.bf16 %v347, %v347
      %349 = vst [vmem:[%s200] sm:$0xf] %v348
      %p350 = scmp.lt.s32.totalorder %s17, 3
      %s351 = scalar_select %p350, %s17, 3
      %p352 = scmp.lt.s32.totalorder %s18, 0
      %s353 = scalar_select %p352, %s18, 0
      %s354 = sadd.s32 %s353, %s351
      %s355 = smul.addr %s354, 4
      %s356 = scalar_lea.vmem %s2, %s355
      // Predicated region
      $region29: #{spc_forward.4} parent=27 // pred_check
        %p357 = pneg %p99
      $region30: #{spc_forward.4} parent=27 // pred_check_branch
        %359 = sbr.rel (%p357) target = $region32
      $region31: #{spc_forward.4} parent=27 // pred_region
        _
      $region32: #{spc_forward.4} parent=27 // pred_fallthru
        _
    $region28: #{spc_forward.4} parent=5 // pred_fallthru
      _
    %p360 = scmp.le.s32.totalorder 2, %s8
    // Predicated region
    $region33: #{spc_forward.4} parent=5 // pred_check
      %p361 = pneg %p360
    $region34: #{spc_forward.4} parent=5 // pred_check_branch
      %363 = sbr.rel (%p361) target = $region36
    $region35: #{spc_forward.4} parent=5 // pred_region
      %s364 = ssub.s32 %s8, 2
      // Predicated region
      $region37: #{spc_forward.4} parent=35 // pred_check
        %p365 = pneg %p105
      $region38: #{spc_forward.4} parent=35 // pred_check_branch
        %367 = sbr.rel (%p365) target = $region40
      $region39: #{spc_forward.4} parent=35 // pred_region
        %p368 = scmp.lt.s32.totalorder %s19, 3
        %s369 = scalar_select %p368, %s19, 3
        %p370 = scmp.lt.s32.totalorder %s20, 0
        %s371 = scalar_select %p370, %s20, 0
        %s372 = sadd.s32 %s371, %s369
        %s373 = smul.addr %s372, 4
        %s374 = scalar_lea.vmem %s2, %s373
      $region40: #{spc_forward.4} parent=35 // pred_fallthru
        _
    $region36: #{spc_forward.4} parent=5 // pred_fallthru
      _
  $region6: #{spc_forward.4} parent=0 // loop_footer
    %s12 = sadd.s32 1, %s8
  $region7: #{spc_forward.4} parent=0 // loop_footer_branch
    %7 = sbr.rel target = $region3
  $region8: #{spc_forward.4} parent=0 // loop_exit
    _

// kernel: spc_forward.5
$region0: #{spc_forward.5}
  #allocation0 [shape = 'u32[]', space=smem, size = 0x4, offset = 0x4, fixed_abs, tag = 'smem constant byte address 0x4 - core index']
  #allocation1 [shape = 'u32[144,128]{1,0:T(1,128)}', space=vmem, size = 0x12000, scoped, tag = 'internal scratch']
  #allocation2 [shape = 'f32[8,256]{1,0:T(8,128)}', space=vmem, size = 0x2000, scoped, tag = 'scratch operand']
  %s0 = inlined_call_operand.vmem [shape: bf16[8,256], index: 0, kind: input, shape index: {}]
  %s1 = inlined_call_operand.vmem [shape: bf16[256,256], index: 1, kind: input, shape index: {}]
  %s2 = inlined_call_operand.vmem [shape: f32[1,256], index: 2, kind: input, shape index: {}]
  %s3 = inlined_call_operand.vmem [shape: bf16[8,256], index: 3, kind: output, shape index: {}]
  %s4 = sld [smem:[#allocation0]]
  $region30: #{spc_forward.5} parent=0
    _
  %s6 = ssub.s32 1, %s4
  %s7 = scalar_select 0, %s6, %s4
  // Predicated region
  $region2: #{spc_forward.5} parent=0 // pred_check
    _
  $region3: #{spc_forward.5} parent=0 // pred_check_branch
    %9 = sbr.rel (0) target = $region5
  $region4: #{spc_forward.5} parent=0 // pred_region
    _
  $region5: #{spc_forward.5} parent=0 // pred_fallthru
    _
  // Predicated region
  $region6: #{spc_forward.5} parent=0 // pred_check
    _
  $region7: #{spc_forward.5} parent=0 // pred_check_branch
    %11 = sbr.rel (0) target = $region9
  $region8: #{spc_forward.5} parent=0 // pred_region
    _
  $region9: #{spc_forward.5} parent=0 // pred_fallthru
    _
  // Predicated region
  $region10: #{spc_forward.5} parent=0 // pred_check
    _
  $region11: #{spc_forward.5} parent=0 // pred_check_branch
    %13 = sbr.rel (0) target = $region13
  $region12: #{spc_forward.5} parent=0 // pred_region
    _
  $region13: #{spc_forward.5} parent=0 // pred_fallthru
    _
  %p14 = scmp.eq.s32.totalorder 0, 0
  // Predicated region
  $region14: #{spc_forward.5} parent=0 // pred_check
    %p15 = pneg %p14
  $region15: #{spc_forward.5} parent=0 // pred_check_branch
    %17 = sbr.rel (%p15) target = $region17
  $region16: #{spc_forward.5} parent=0 // pred_region
    %18 = vst [vmem:[#allocation2] sm:$0xff] 0.0
    %19 = vst [vmem:[#allocation2 + $0x8] sm:$0xff] 0.0
  $region17: #{spc_forward.5} parent=0 // pred_fallthru
    _
  %v20 = vld [vmem:[#allocation2] sm:$0xff]
  %v21 = vld [vmem:[#allocation2 + $0x8] sm:$0xff]
  %v22 = vld [vmem:[%s0] sm:$0xff]
  %v23 = vld [vmem:[%s1] sm:$0xff]
  %v24 = vld [vmem:[%s1 + $0x8] sm:$0xff]
  %v25 = vld [vmem:[%s1 + $0x10] sm:$0xff]
  %v26 = vld [vmem:[%s1 + $0x18] sm:$0xff]
  %v27 = vld [vmem:[%s1 + $0x20] sm:$0xff]
  %v28 = vld [vmem:[%s1 + $0x28] sm:$0xff]
  %v29 = vld [vmem:[%s1 + $0x30] sm:$0xff]
  %v30 = vld [vmem:[%s1 + $0x38] sm:$0xff]
  %v31 = vld [vmem:[%s1 + $0x40] sm:$0xff]
  %v32 = vld [vmem:[%s1 + $0x48] sm:$0xff]
  %v33 = vld [vmem:[%s1 + $0x50] sm:$0xff]
  %v34 = vld [vmem:[%s1 + $0x58] sm:$0xff]
  %v35 = vld [vmem:[%s1 + $0x60] sm:$0xff]
  %v36 = vld [vmem:[%s1 + $0x68] sm:$0xff]
  %v37 = vld [vmem:[%s1 + $0x70] sm:$0xff]
  %v38 = vld [vmem:[%s1 + $0x78] sm:$0xff]
  %v39 = vld [vmem:[%s1 + $0x80] sm:$0xff]
  %v40 = vld [vmem:[%s1 + $0x88] sm:$0xff]
  %v41 = vld [vmem:[%s1 + $0x90] sm:$0xff]
  %v42 = vld [vmem:[%s1 + $0x98] sm:$0xff]
  %v43 = vld [vmem:[%s1 + $0xa0] sm:$0xff]
  %v44 = vld [vmem:[%s1 + $0xa8] sm:$0xff]
  %v45 = vld [vmem:[%s1 + $0xb0] sm:$0xff]
  %v46 = vld [vmem:[%s1 + $0xb8] sm:$0xff]
  %v47 = vld [vmem:[%s1 + $0xc0] sm:$0xff]
  %v48 = vld [vmem:[%s1 + $0xc8] sm:$0xff]
  %v49 = vld [vmem:[%s1 + $0xd0] sm:$0xff]
  %v50 = vld [vmem:[%s1 + $0xd8] sm:$0xff]
  %v51 = vld [vmem:[%s1 + $0xe0] sm:$0xff]
  %v52 = vld [vmem:[%s1 + $0xe8] sm:$0xff]
  %v53 = vld [vmem:[%s1 + $0xf0] sm:$0xff]
  %v54 = vld [vmem:[%s1 + $0xf8] sm:$0xff]
  %v56 = vunpack.c.l.b16 %v22
  %v57 = vunpack.c.h.b16 %v22
  %v58 = vpack.c.b16 %v56, %v56
  %v59 = vpack.c.b16 %v57, %v57
  %v94 = vunpack.c.l.b16 %v23
  %v95 = vunpack.c.h.b16 %v23
  %v96 = vunpack.c.l.b16 %v24
  %v97 = vunpack.c.h.b16 %v24
  %v98 = vunpack.c.l.b16 %v25
  %v99 = vunpack.c.h.b16 %v25
  %v100 = vunpack.c.l.b16 %v26
  %v101 = vunpack.c.h.b16 %v26
  %v102 = vunpack.c.l.b16 %v27
  %v103 = vunpack.c.h.b16 %v27
  %v104 = vunpack.c.l.b16 %v28
  %v105 = vunpack.c.h.b16 %v28
  %v106 = vunpack.c.l.b16 %v29
  %v107 = vunpack.c.h.b16 %v29
  %v108 = vunpack.c.l.b16 %v30
  %v109 = vunpack.c.h.b16 %v30
  %v110 = vunpack.c.l.b16 %v31
  %v111 = vunpack.c.h.b16 %v31
  %v112 = vunpack.c.l.b16 %v32
  %v113 = vunpack.c.h.b16 %v32
  %v114 = vunpack.c.l.b16 %v33
  %v115 = vunpack.c.h.b16 %v33
  %v116 = vunpack.c.l.b16 %v34
  %v117 = vunpack.c.h.b16 %v34
  %v118 = vunpack.c.l.b16 %v35
  %v119 = vunpack.c.h.b16 %v35
  %v120 = vunpack.c.l.b16 %v36
  %v121 = vunpack.c.h.b16 %v36
  %v122 = vunpack.c.l.b16 %v37
  %v123 = vunpack.c.h.b16 %v37
  %v124 = vunpack.c.l.b16 %v38
  %v125 = vunpack.c.h.b16 %v38
  %v126 = vunpack.c.l.b16 %v39
  %v127 = vunpack.c.h.b16 %v39
  %v128 = vunpack.c.l.b16 %v40
  %v129 = vunpack.c.h.b16 %v40
  %v130 = vunpack.c.l.b16 %v41
  %v131 = vunpack.c.h.b16 %v41
  %v132 = vunpack.c.l.b16 %v42
  %v133 = vunpack.c.h.b16 %v42
  %v134 = vunpack.c.l.b16 %v43
  %v135 = vunpack.c.h.b16 %v43
  %v136 = vunpack.c.l.b16 %v44
  %v137 = vunpack.c.h.b16 %v44
  %v138 = vunpack.c.l.b16 %v45
  %v139 = vunpack.c.h.b16 %v45
  %v140 = vunpack.c.l.b16 %v46
  %v141 = vunpack.c.h.b16 %v46
  %v142 = vunpack.c.l.b16 %v47
  %v143 = vunpack.c.h.b16 %v47
  %v144 = vunpack.c.l.b16 %v48
  %v145 = vunpack.c.h.b16 %v48
  %v146 = vunpack.c.l.b16 %v49
  %v147 = vunpack.c.h.b16 %v49
  %v148 = vunpack.c.l.b16 %v50
  %v149 = vunpack.c.h.b16 %v50
  %v150 = vunpack.c.l.b16 %v51
  %v151 = vunpack.c.h.b16 %v51
  %v152 = vunpack.c.l.b16 %v52
  %v153 = vunpack.c.h.b16 %v52
  %v154 = vunpack.c.l.b16 %v53
  %v155 = vunpack.c.h.b16 %v53
  %v156 = vunpack.c.l.b16 %v54
  %v157 = vunpack.c.h.b16 %v54
  %v158 = vpack.c.b16 %v96, %v94
  %v159 = vpack.c.b16 %v97, %v95
  %v160 = vpack.c.b16 %v100, %v98
  %v161 = vpack.c.b16 %v101, %v99
  %v162 = vpack.c.b16 %v104, %v102
  %v163 = vpack.c.b16 %v105, %v103
  %v164 = vpack.c.b16 %v108, %v106
  %v165 = vpack.c.b16 %v109, %v107
  %v166 = vpack.c.b16 %v112, %v110
  %v167 = vpack.c.b16 %v113, %v111
  %v168 = vpack.c.b16 %v116, %v114
  %v169 = vpack.c.b16 %v117, %v115
  %v170 = vpack.c.b16 %v120, %v118
  %v171 = vpack.c.b16 %v121, %v119
  %v172 = vpack.c.b16 %v124, %v122
  %v173 = vpack.c.b16 %v125, %v123
  %v174 = vpack.c.b16 %v128, %v126
  %v175 = vpack.c.b16 %v129, %v127
  %v176 = vpack.c.b16 %v132, %v130
  %v177 = vpack.c.b16 %v133, %v131
  %v178 = vpack.c.b16 %v136, %v134
  %v179 = vpack.c.b16 %v137, %v135
  %v180 = vpack.c.b16 %v140, %v138
  %v181 = vpack.c.b16 %v141, %v139
  %v182 = vpack.c.b16 %v144, %v142
  %v183 = vpack.c.b16 %v145, %v143
  %v184 = vpack.c.b16 %v148, %v146
  %v185 = vpack.c.b16 %v149, %v147
  %v186 = vpack.c.b16 %v152, %v150
  %v187 = vpack.c.b16 %v153, %v151
  %v188 = vpack.c.b16 %v156, %v154
  %v189 = vpack.c.b16 %v157, %v155
  %222 = vmatprep.subr.bf16.mxu0 %v173
  %223 = vmatpush1.bf16.msra.mxu0 %v172
  %224 = vmatprep.subr.bf16.mxu0 %v171
  %225 = vmatpush1.bf16.msra.mxu0 %v170
  %226 = vmatprep.subr.bf16.mxu0 %v169
  %227 = vmatpush1.bf16.msra.mxu0 %v168
  %228 = vmatprep.subr.bf16.mxu0 %v167
  %229 = vmatpush1.bf16.msra.mxu0 %v166
  %230 = vmatprep.subr.bf16.mxu0 %v165
  %231 = vmatpush1.bf16.msra.mxu0 %v164
  %232 = vmatprep.subr.bf16.mxu0 %v163
  %233 = vmatpush1.bf16.msra.mxu0 %v162
  %234 = vmatprep.subr.bf16.mxu0 %v161
  %235 = vmatpush1.bf16.msra.mxu0 %v160
  %236 = vmatprep.subr.bf16.mxu0 %v159
  %237 = vmatpush1.bf16.msra.mxu0 %v158
  %238 = vmatprep.subr.bf16.mxu0 %v189
  %239 = vmatpush2.bf16.msra.mxu0 %v188
  %240 = vmatprep.subr.bf16.mxu0 %v187
  %241 = vmatpush2.bf16.msra.mxu0 %v186
  %242 = vmatprep.subr.bf16.mxu0 %v185
  %243 = vmatpush2.bf16.msra.mxu0 %v184
  %244 = vmatprep.subr.bf16.mxu0 %v183
  %245 = vmatpush2.bf16.msra.mxu0 %v182
  %246 = vmatprep.subr.bf16.mxu0 %v181
  %247 = vmatpush2.bf16.msra.mxu0 %v180
  %248 = vmatprep.subr.bf16.mxu0 %v179
  %249 = vmatpush2.bf16.msra.mxu0 %v178
  %250 = vmatprep.subr.bf16.mxu0 %v177
  %251 = vmatpush2.bf16.msra.mxu0 %v176
  %252 = vmatprep.subr.bf16.mxu0 %v175
  %253 = vmatpush2.bf16.msra.mxu0 %v174
  %254 = vmatprep.mubr.bf16.mxu0 %v59
  %255 = vmatmul.mubr.bf16.gmra.mxu0 %v58
  %v256 = vpop.f32.mrf.mxu0
  %v257 = vadd.f32 0.0, %v256
  %v258 = vpop.f32.mrf.mxu0
  %v259 = vadd.f32 0.0, %v258
  %v260 = vpop.f32.mrf.mxu0
  %v261 = vpop.f32.mrf.mxu0
  %262 = vdwg.mxu0
  %v263 = vadd.f32 %v20, %v257
  %v264 = vadd.f32 %v21, %v259
  %265 = vst [vmem:[#allocation2] sm:$0xff] %v263
  %266 = vst [vmem:[#allocation2 + $0x8] sm:$0xff] %v264
  // Predicated region
  $region18: #{spc_forward.5} parent=0 // pred_check
    %p267 = pneg %p14
  $region19: #{spc_forward.5} parent=0 // pred_check_branch
    %269 = sbr.rel (%p267) target = $region21
  $region20: #{spc_forward.5} parent=0 // pred_region
    %v270 = vld [vmem:[#allocation2] sm:$0xff]
    %v271 = vld [vmem:[#allocation2 + $0x8] sm:$0xff]
    %v272 = vld [vmem:[%s2] sm:$0x3]
    %v274 = vlaneseq
    %v275 = vshrl.u32 %v274, 7
    %v276 = vsub.s32 0, %v275
    %v277 = vrot.slane %v272, %v276
    %v278 = vlaneseq
    %v279 = vshrl.u32 %v278, 7
    %v280 = vsub.s32 1, %v279
    %v281 = vrot.slane %v272, %v280
    %v284 = vadd.f32 %v270, %v277
    %v285 = vadd.f32 %v271, %v281
    %v286 = vmax.f32 %v284, 0.0
    %v287 = vmax.f32 %v285, 0.0
    %v288 = vpack.c.bf16 %v286, %v286
    %v289 = vpack.c.bf16 %v287, %v287
    %v292 = vunpack.c.l.b16 %v288
    %v293 = vunpack.c.l.b16 %v289
    %v294 = vpack.c.b16 %v293, %v292
    %296 = vst [vmem:[%s3] sm:$0xff] %v294
  $region21: #{spc_forward.5} parent=0 // pred_fallthru
    _
  // Predicated region
  $region22: #{spc_forward.5} parent=0 // pred_check
    _
  $region23: #{spc_forward.5} parent=0 // pred_check_branch
    %298 = sbr.rel (0) target = $region25
  $region24: #{spc_forward.5} parent=0 // pred_region
    _
  $region25: #{spc_forward.5} parent=0 // pred_fallthru
    _
  // Predicated region
  $region26: #{spc_forward.5} parent=0 // pred_check
    _
  $region27: #{spc_forward.5} parent=0 // pred_check_branch
    %300 = sbr.rel (0) target = $region29
  $region28: #{spc_forward.5} parent=0 // pred_region
    _
  $region29: #{spc_forward.5} parent=0 // pred_fallthru
    _

// kernel: spc_forward.7
$region0: #{spc_forward.7}
  #allocation0 [shape = 'u32[]', space=smem, size = 0x4, offset = 0x4, fixed_abs, tag = 'smem constant byte address 0x4 - core index']
  #allocation1 [shape = 'u32[144,128]{1,0:T(1,128)}', space=vmem, size = 0x12000, scoped, tag = 'internal scratch']
  #allocation2 [shape = 'f32[8,128]{1,0:T(8,128)}', space=vmem, size = 0x1000, scoped, tag = 'scratch operand']
  %s0 = inlined_call_operand.vmem [shape: bf16[8,256], index: 0, kind: input, shape index: {}]
  %s1 = inlined_call_operand.vmem [shape: bf16[256,128], index: 1, kind: input, shape index: {}]
  %s2 = inlined_call_operand.vmem [shape: f32[1,128], index: 2, kind: input, shape index: {}]
  %s3 = inlined_call_operand.hbm [shape: f32[8,128], index: 3, kind: output, shape index: {}]
  %s4 = sld [smem:[#allocation0]]
  $region30: #{spc_forward.7} parent=0
    _
  %s6 = ssub.s32 1, %s4
  %s7 = scalar_select 0, %s6, %s4
  $region1: #{spc_forward.7} parent=0
    #allocation3 [shape = 'u8[4096]{0}', space=vmem, size = 0x1000, scoped, tag = 'output window, operand 0, single buffered']
    #allocation4 [shape = 's32[1]{0}', space=sflag, size = 0x4, scoped, tag = 'scoped memory for spc_forward.7']
    %8 = vsyncpa [#allocation4], 0
    // Predicated region
    $region2: #{spc_forward.7} parent=1 // pred_check
      _
    $region3: #{spc_forward.7} parent=1 // pred_check_branch
      %10 = sbr.rel (0) target = $region5
    $region4: #{spc_forward.7} parent=1 // pred_region
      _
    $region5: #{spc_forward.7} parent=1 // pred_fallthru
      _
    // Predicated region
    $region6: #{spc_forward.7} parent=1 // pred_check
      _
    $region7: #{spc_forward.7} parent=1 // pred_check_branch
      %12 = sbr.rel (0) target = $region9
    $region8: #{spc_forward.7} parent=1 // pred_region
      _
    $region9: #{spc_forward.7} parent=1 // pred_fallthru
      _
    // Predicated region
    $region10: #{spc_forward.7} parent=1 // pred_check
      _
    $region11: #{spc_forward.7} parent=1 // pred_check_branch
      %14 = sbr.rel (0) target = $region13
    $region12: #{spc_forward.7} parent=1 // pred_region
      _
    $region13: #{spc_forward.7} parent=1 // pred_fallthru
      _
    %p16 = scmp.eq.s32.totalorder 0, 0
    // Predicated region
    $region14: #{spc_forward.7} parent=1 // pred_check
      %p17 = pneg %p16
    $region15: #{spc_forward.7} parent=1 // pred_check_branch
      %19 = sbr.rel (%p17) target = $region17
    $region16: #{spc_forward.7} parent=1 // pred_region
      %20 = vst [vmem:[#allocation2] sm:$0xff] 0.0
    $region17: #{spc_forward.7} parent=1 // pred_fallthru
      _
    %v21 = vld [vmem:[#allocation2] sm:$0xff]
    %v22 = vld [vmem:[%s0] sm:$0xff]
    %v23 = vld [vmem:[%s1] sm:$0xf]
    %v24 = vld [vmem:[%s1 + $0x4] sm:$0xf]
    %v25 = vld [vmem:[%s1 + $0x8] sm:$0xf]
    %v26 = vld [vmem:[%s1 + $0xc] sm:$0xf]
    %v27 = vld [vmem:[%s1 + $0x10] sm:$0xf]
    %v28 = vld [vmem:[%s1 + $0x14] sm:$0xf]
    %v29 = vld [vmem:[%s1 + $0x18] sm:$0xf]
    %v30 = vld [vmem:[%s1 + $0x1c] sm:$0xf]
    %v31 = vld [vmem:[%s1 + $0x20] sm:$0xf]
    %v32 = vld [vmem:[%s1 + $0x24] sm:$0xf]
    %v33 = vld [vmem:[%s1 + $0x28] sm:$0xf]
    %v34 = vld [vmem:[%s1 + $0x2c] sm:$0xf]
    %v35 = vld [vmem:[%s1 + $0x30] sm:$0xf]
    %v36 = vld [vmem:[%s1 + $0x34] sm:$0xf]
    %v37 = vld [vmem:[%s1 + $0x38] sm:$0xf]
    %v38 = vld [vmem:[%s1 + $0x3c] sm:$0xf]
    %v39 = vld [vmem:[%s1 + $0x40] sm:$0xf]
    %v40 = vld [vmem:[%s1 + $0x44] sm:$0xf]
    %v41 = vld [vmem:[%s1 + $0x48] sm:$0xf]
    %v42 = vld [vmem:[%s1 + $0x4c] sm:$0xf]
    %v43 = vld [vmem:[%s1 + $0x50] sm:$0xf]
    %v44 = vld [vmem:[%s1 + $0x54] sm:$0xf]
    %v45 = vld [vmem:[%s1 + $0x58] sm:$0xf]
    %v46 = vld [vmem:[%s1 + $0x5c] sm:$0xf]
    %v47 = vld [vmem:[%s1 + $0x60] sm:$0xf]
    %v48 = vld [vmem:[%s1 + $0x64] sm:$0xf]
    %v49 = vld [vmem:[%s1 + $0x68] sm:$0xf]
    %v50 = vld [vmem:[%s1 + $0x6c] sm:$0xf]
    %v51 = vld [vmem:[%s1 + $0x70] sm:$0xf]
    %v52 = vld [vmem:[%s1 + $0x74] sm:$0xf]
    %v53 = vld [vmem:[%s1 + $0x78] sm:$0xf]
    %v54 = vld [vmem:[%s1 + $0x7c] sm:$0xf]
    %v56 = vunpack.c.l.b16 %v22
    %v57 = vunpack.c.h.b16 %v22
    %v58 = vpack.c.b16 %v56, %v56
    %v59 = vpack.c.b16 %v57, %v57
    %v94 = vunpack.c.l.b16 %v23
    %v95 = vunpack.c.l.b16 %v24
    %v96 = vunpack.c.l.b16 %v25
    %v97 = vunpack.c.l.b16 %v26
    %v98 = vunpack.c.l.b16 %v27
    %v99 = vunpack.c.l.b16 %v28
    %v100 = vunpack.c.l.b16 %v29
    %v101 = vunpack.c.l.b16 %v30
    %v102 = vunpack.c.l.b16 %v31
    %v103 = vunpack.c.l.b16 %v32
    %v104 = vunpack.c.l.b16 %v33
    %v105 = vunpack.c.l.b16 %v34
    %v106 = vunpack.c.l.b16 %v35
    %v107 = vunpack.c.l.b16 %v36
    %v108 = vunpack.c.l.b16 %v37
    %v109 = vunpack.c.l.b16 %v38
    %v110 = vunpack.c.l.b16 %v39
    %v111 = vunpack.c.l.b16 %v40
    %v112 = vunpack.c.l.b16 %v41
    %v113 = vunpack.c.l.b16 %v42
    %v114 = vunpack.c.l.b16 %v43
    %v115 = vunpack.c.l.b16 %v44
    %v116 = vunpack.c.l.b16 %v45
    %v117 = vunpack.c.l.b16 %v46
    %v118 = vunpack.c.l.b16 %v47
    %v119 = vunpack.c.l.b16 %v48
    %v120 = vunpack.c.l.b16 %v49
    %v121 = vunpack.c.l.b16 %v50
    %v122 = vunpack.c.l.b16 %v51
    %v123 = vunpack.c.l.b16 %v52
    %v124 = vunpack.c.l.b16 %v53
    %v125 = vunpack.c.l.b16 %v54
    %v126 = vpack.c.b16 %v95, %v94
    %v127 = vpack.c.b16 %v97, %v96
    %v128 = vpack.c.b16 %v99, %v98
    %v129 = vpack.c.b16 %v101, %v100
    %v130 = vpack.c.b16 %v103, %v102
    %v131 = vpack.c.b16 %v105, %v104
    %v132 = vpack.c.b16 %v107, %v106
    %v133 = vpack.c.b16 %v109, %v108
    %v134 = vpack.c.b16 %v111, %v110
    %v135 = vpack.c.b16 %v113, %v112
    %v136 = vpack.c.b16 %v115, %v114
    %v137 = vpack.c.b16 %v117, %v116
    %v138 = vpack.c.b16 %v119, %v118
    %v139 = vpack.c.b16 %v121, %v120
    %v140 = vpack.c.b16 %v123, %v122
    %v141 = vpack.c.b16 %v125, %v124
    %158 = vmatprep.subr.bf16.mxu0 0
    %159 = vmatpush1.bf16.msra.mxu0 %v133
    %160 = vmatprep.subr.bf16.mxu0 0
    %161 = vmatpush1.bf16.msra.mxu0 %v132
    %162 = vmatprep.subr.bf16.mxu0 0
    %163 = vmatpush1.bf16.msra.mxu0 %v131
    %164 = vmatprep.subr.bf16.mxu0 0
    %165 = vmatpush1.bf16.msra.mxu0 %v130
    %166 = vmatprep.subr.bf16.mxu0 0
    %167 = vmatpush1.bf16.msra.mxu0 %v129
    %168 = vmatprep.subr.bf16.mxu0 0
    %169 = vmatpush1.bf16.msra.mxu0 %v128
    %170 = vmatprep.subr.bf16.mxu0 0
    %171 = vmatpush1.bf16.msra.mxu0 %v127
    %172 = vmatprep.subr.bf16.mxu0 0
    %173 = vmatpush1.bf16.msra.mxu0 %v126
    %174 = vmatprep.subr.bf16.mxu0 0
    %175 = vmatpush2.bf16.msra.mxu0 %v141
    %176 = vmatprep.subr.bf16.mxu0 0
    %177 = vmatpush2.bf16.msra.mxu0 %v140
    %178 = vmatprep.subr.bf16.mxu0 0
    %179 = vmatpush2.bf16.msra.mxu0 %v139
    %180 = vmatprep.subr.bf16.mxu0 0
    %181 = vmatpush2.bf16.msra.mxu0 %v138
    %182 = vmatprep.subr.bf16.mxu0 0
    %183 = vmatpush2.bf16.msra.mxu0 %v137
    %184 = vmatprep.subr.bf16.mxu0 0
    %185 = vmatpush2.bf16.msra.mxu0 %v136
    %186 = vmatprep.subr.bf16.mxu0 0
    %187 = vmatpush2.bf16.msra.mxu0 %v135
    %188 = vmatprep.subr.bf16.mxu0 0
    %189 = vmatpush2.bf16.msra.mxu0 %v134
    %190 = vmatprep.mubr.bf16.mxu0 %v59
    %191 = vmatmul.mubr.bf16.gmra.mxu0 %v58
    %v192 = vpop.f32.mrf.mxu0
    %v193 = vadd.f32 0.0, %v192
    %v194 = vpop.f32.mrf.mxu0
    %v195 = vpop.f32.mrf.mxu0
    %v196 = vpop.f32.mrf.mxu0
    %197 = vdwg.mxu0
    %v198 = vadd.f32 %v21, %v193
    %199 = vst [vmem:[#allocation2] sm:$0xff] %v198
    // Predicated region
    $region18: #{spc_forward.7} parent=1 // pred_check
      %p200 = pneg %p16
    $region19: #{spc_forward.7} parent=1 // pred_check_branch
      %202 = sbr.rel (%p200) target = $region21
    $region20: #{spc_forward.7} parent=1 // pred_region
      %v203 = vld [vmem:[#allocation2] sm:$0xff]
      %v204 = vld [vmem:[%s2] sm:$0x1]
      %v206 = vlaneseq
      %v207 = vshrl.u32 %v206, 7
      %v208 = vsub.s32 0, %v207
      %v209 = vrot.slane %v204, %v208
      %v211 = vadd.f32 %v203, %v209
      %212 = vmax.xlane.f32.xlu0 %v211
      %v213 = vpop.xlane.xlu0 %212
      %v214 = vsub.f32 %v211, %v213
      %v215 = vmul.f32 %v214, 1.442695
      %v216 = vpow.pop %v215
      %217 = vadd.xlane.f32.xlu0 %v216
      %v218 = vpop.xlane.xlu0 %217
      %v219 = vlog2.pop %v218
      %v220 = vmul.f32 %v219, 0.6931472
      %v221 = vsub.f32 %v214, %v220
      %222 = vst [vmem:[#allocation3] sm:$0xff] %v221
    $region21: #{spc_forward.7} parent=1 // pred_fallthru
      _
    // Predicated region
    $region22: #{spc_forward.7} parent=1 // pred_check
      _
    $region23: #{spc_forward.7} parent=1 // pred_check_branch
      %224 = sbr.rel (0) target = $region25
    $region24: #{spc_forward.7} parent=1 // pred_region
      %s226 = ssub.s32 128, 128
      %227 = vsyncadd [#allocation4], %s226
      %s229 = sshll.u32 [#allocation3], 4
      %s230 = int_to_ptr.vmem [resolvable:$true] %s229
      %232 = dma.vmem_to_hbm [thread:$0]  %s230, 128, %s3, [#allocation4]
    $region25: #{spc_forward.7} parent=1 // pred_fallthru
      _
    // Predicated region
    $region26: #{spc_forward.7} parent=1 // pred_check
      _
    $region27: #{spc_forward.7} parent=1 // pred_check_branch
      %234 = sbr.rel (0) target = $region29
    $region28: #{spc_forward.7} parent=1 // pred_region
      %235 = dma.done [#allocation4], 128
    $region29: #{spc_forward.7} parent=1 // pred_fallthru
      _
    %236 = vsyncpa [#allocation4], 1

</llo_original>
